<compile_context>
chip_gen: v7x
topology: tpu7x:2x2x1
jax: 0.10.0
libtpu: 0.0.40
codegen_flags: <defaults>
</compile_context>

<pallas_src>
import functools

import jax
import jax.numpy as jnp
from jax.experimental import pallas as pl
from jax.experimental.pallas import tpu as pltpu

# strings_utils.SpecialSymbol.PADDING.value in ludwig
IGNORE_INDEX = 2

# Lanes per fused online-LSE vocab chunk (multiple of 128).
_VOCAB_CHUNK = 2048
# Cap on the native-dtype logits block per grid step.
_MAX_BLOCK_BYTES = 16 * 1024 * 1024


def _tpu_budgets():
    """Returns (vmem_capacity_bytes, num_cores_for_parallel_grid_axis)."""
    kind = ""
    try:
        kind = jax.devices()[0].device_kind.lower()
    except Exception:
        pass
    capacity = None
    try:
        capacity = int(pltpu.get_tpu_info().vmem_capacity_bytes)
    except Exception:
        capacity = None
    if capacity is None:
        if "v2" in kind or "v3" in kind:
            capacity = 16 * 1024 * 1024
        elif "7" in kind:
            capacity = 64 * 1024 * 1024
        else:
            capacity = 128 * 1024 * 1024
    # 2 TensorCores reachable via the "parallel" grid axis on v4 / v5p / v7x;
    # on single-TC parts (v5e / v6e) a size-2 axis is just a serial loop with
    # extra masking, so keep it at 1 there.
    num_cores = 2 if ("7" in kind or "v4" in kind or "v5p" in kind) else 1
    return capacity, num_cores


def _sce_kernel(logits_ref, tgt_ref, sum_ref, cnt_ref, *,
                num_cores, chunks_per_core, total_chunks, s_chunks,
                tile_s, seq_len, vocab, vocab_chunk):
    c = pl.program_id(0)   # megacore ("parallel") axis
    i = pl.program_id(1)   # row-chunk ("arbitrary") reduction axis

    # Output blocks are resident across the reduction axis: zero them once.
    @pl.when(i == 0)
    def _():
        sum_ref[...] = jnp.zeros_like(sum_ref)
        cnt_ref[...] = jnp.zeros_like(cnt_ref)

    tgt = tgt_ref[...]                                     # (tile_s, 1) int32

    # --- fused single pass over the vocab: online logsumexp + target pick ---
    # TODO(synk): if the bundle dump shows the VALU slot saturating for bf16
    # logits, offload the exp-sum / pick lane reductions to the idle MXU via
    # jnp.dot against a ones (chunk, 128) f32 matrix.
    cw = min(vocab_chunk, vocab)
    col_full = jax.lax.broadcasted_iota(jnp.int32, (tile_s, cw), 1)  # hoisted

    m = s_run = picked = None
    c0 = 0
    while c0 < vocab:                                      # static, traced once
        w = min(vocab_chunk, vocab - c0)
        xc = logits_ref[:, c0:c0 + w].astype(jnp.float32)  # (tile_s, w) f32
        col = col_full if w == cw else jax.lax.broadcasted_iota(
            jnp.int32, (tile_s, w), 1)
        pick = jnp.sum(jnp.where(col == (tgt - c0), xc, 0.0),
                       axis=-1, keepdims=True)
        cm = jnp.max(xc, axis=-1, keepdims=True)
        if c0 == 0:
            m = cm
            s_run = jnp.sum(jnp.exp(xc - m), axis=-1, keepdims=True)
            picked = pick
        else:
            m_new = jnp.maximum(m, cm)
            s_run = s_run * jnp.exp(m - m_new) + jnp.sum(
                jnp.exp(xc - m_new), axis=-1, keepdims=True)
            m = m_new
            picked = picked + pick
        c0 += w

    lse = jnp.log(s_run) + m                               # (tile_s, 1)

    valid = tgt != IGNORE_INDEX                            # (tile_s, 1) bool

    # Mask rows that hang past seq_len in a partial last S-chunk (those rows
    # read unspecified padded data; jnp.where below blocks any NaN/Inf).
    if seq_len % tile_s != 0:
        rows = jax.lax.broadcasted_iota(jnp.int32, (tile_s, 1), 0)
        if s_chunks == 1:
            s_start = 0
        else:
            s_start = ((c * chunks_per_core + i) % s_chunks) * tile_s
        valid = valid & ((s_start + rows) < seq_len)

    # Mask whole chunks that only exist because of the megacore round-up.
    if chunks_per_core * num_cores != total_chunks:
        valid = valid & ((c * chunks_per_core + i) < total_chunks)

    loss = jnp.where(valid, lse - picked, 0.0)             # masked rows -> 0
    # Row-reduce each step (cross-sublane, XLU has slack) into per-core scalars.
    sum_ref[...] += jnp.sum(loss, axis=0, keepdims=True)
    cnt_ref[...] += jnp.sum(valid.astype(jnp.int32), axis=0, keepdims=True)


@jax.jit
def sequence_softmax_cross_entropy_loss(preds, target):
    """preds: [B, S, V] float logits; target: [B, S] int ids. Scalar mean CE loss."""
    b, s, v = preds.shape
    if b < 2:
        # preds[1:] is empty -> mean over zero elements (PyTorch returns NaN).
        return jnp.array(jnp.nan, dtype=jnp.float32)

    target = target.astype(jnp.int32).reshape(b, s, 1)     # .long() equivalent

    itemsize = preds.dtype.itemsize
    min_rows = {4: 8, 2: 16, 1: 32}.get(itemsize, 8)       # sublane-packing floor

    vmem_capacity, num_cores = _tpu_budgets()
    vmem_limit = (vmem_capacity * 3) // 4                  # ~96 MiB v6e, ~48 MiB v7x

    # --- tile-size selection -------------------------------------------------
    # Account for the double-buffered native input block plus the in-flight f32
    # chunk temporaries of the fused online-LSE pass.
    block_budget = min(_MAX_BLOCK_BYTES, vmem_capacity // 8)
    rows_from_block = max(1, block_budget // (v * itemsize))
    row_cost = 2 * v * itemsize + 6 * min(v, _VOCAB_CHUNK) * 4
    rows_from_vmem = max(1, (vmem_limit * 3 // 4) // row_cost)
    budget_rows = min(rows_from_block, rows_from_vmem)
    if budget_rows >= s:
        tile_s = s                                         # full-dim block, always legal
    else:
        tile_s = max(min_rows, (budget_rows // min_rows) * min_rows)
    s_chunks = -(-s // tile_s)

    n_batches = b - 1
    total_chunks = n_batches * s_chunks
    chunks_per_core = -(-total_chunks // num_cores)
    need_clamp = chunks_per_core * num_cores != total_chunks

    def in_index_map(c, i):
        chunk = c * chunks_per_core + i
        if need_clamp:
            chunk = jnp.minimum(chunk, total_chunks - 1)
        if s_chunks == 1:
            return chunk + 1, 0, 0                         # "+1" skips batch element 0
        return chunk // s_chunks + 1, chunk % s_chunks, 0

    out_index_map = lambda c, i: (c, 0, 0)

    n_rows = n_batches * s
    cost = pl.CostEstimate(
        flops=6 * n_rows * v,
        transcendentals=n_rows * v + 2 * n_rows,
        bytes_accessed=n_rows * v * itemsize + n_rows * 4 + 2 * num_cores * 4,
    )

    kernel = functools.partial(
        _sce_kernel,
        num_cores=num_cores,
        chunks_per_core=chunks_per_core,
        total_chunks=total_chunks,
        s_chunks=s_chunks,
        tile_s=tile_s,
        seq_len=s,
        vocab=v,
        vocab_chunk=_VOCAB_CHUNK,
    )

    sum_out, cnt_out = pl.pallas_call(
        kernel,
        out_shape=(
            jax.ShapeDtypeStruct((num_cores, 1, 1), jnp.float32),
            jax.ShapeDtypeStruct((num_cores, 1, 1), jnp.int32),
        ),
        grid_spec=pltpu.PrefetchScalarGridSpec(
            num_scalar_prefetch=0,
            grid=(num_cores, chunks_per_core),
            in_specs=[
                pl.BlockSpec((None, tile_s, v), in_index_map),   # native-dtype DMA
                pl.BlockSpec((None, tile_s, 1), in_index_map),
            ],
            out_specs=(
                pl.BlockSpec((None, 1, 1), out_index_map),
                pl.BlockSpec((None, 1, 1), out_index_map),
            ),
        ),
        compiler_params=pltpu.CompilerParams(
            dimension_semantics=("parallel", "arbitrary"),
            vmem_limit_bytes=vmem_limit,
        ),
        cost_estimate=cost,
    )(preds, target)

    # reduction='mean' over non-ignored elements (0/0 -> NaN, like PyTorch).
    return jnp.sum(sum_out) / jnp.sum(cnt_out).astype(jnp.float32)


def _reference_loss(preds, target):
    """Pure-JAX reference mirroring nn.CrossEntropyLoss(ignore_index=IGNORE_INDEX)."""
    p = preds[1:].reshape(-1, preds.shape[-1]).astype(jnp.float32)
    t = target[1:].reshape(-1).astype(jnp.int32)
    m = jnp.max(p, axis=-1)
    lse = jnp.log(jnp.sum(jnp.exp(p - m[:, None]), axis=-1)) + m
    picked = jnp.take_along_axis(p, t[:, None], axis=-1)[:, 0]
    valid = t != IGNORE_INDEX
    loss = jnp.where(valid, lse - picked, 0.0)
    return jnp.sum(loss) / jnp.sum(valid)


if __name__ == "__main__":
    batch, seq_len, vocab = 2, 8, 32
    key = jax.random.PRNGKey(0)
    k_preds, k_tgt = jax.random.split(key)

    preds = jax.random.normal(k_preds, (batch, seq_len, vocab), dtype=jnp.float32)
    target = jax.random.randint(k_tgt, (batch, seq_len), 0, vocab, dtype=jnp.int32)

    out = sequence_softmax_cross_entropy_loss(preds, target)
    out = jax.block_until_ready(out)

    ref = _reference_loss(preds, target)
    assert jnp.allclose(out, ref, atol=1e-5, rtol=1e-5), (out, ref)

    print("KERNEL_OK")
</pallas_src>

<mosaic_0001>
module attributes {stable_mosaic.version = 11 : i64} {
  func.func @_sce_kernel(%arg0: i32, %arg1: i32, %arg2: memref<1x8x32xf32, #tpu.memory_space<vmem>>, %arg3: memref<1x8x1xi32, #tpu.memory_space<vmem>>, %arg4: memref<1x1x1xf32, #tpu.memory_space<vmem>>, %arg5: memref<1x1x1xi32, #tpu.memory_space<vmem>>) attributes {dimension_semantics = [#tpu.dimension_semantics<parallel>, #tpu.dimension_semantics<arbitrary>], iteration_bounds = array<i64: 1, 1>, scalar_prefetch = 0 : i64, scratch_operands = 0 : i64, tpu.core_type = #tpu.core_type<tc>, window_params = [{transform_indices = @transform_0, window_bounds = array<i64: 1, 8, 32>}, {transform_indices = @transform_1, window_bounds = array<i64: 1, 8, 1>}, {transform_indices = @transform_2, window_bounds = array<i64: 1, 1, 1>}, {transform_indices = @transform_3, window_bounds = array<i64: 1, 1, 1>}]} {
    %c0_i32 = arith.constant 0 : i32
    %0 = arith.cmpi eq, %arg1, %c0_i32 : i32
    %1 = arith.extui %0 : i1 to i32
    %c0_i32_0 = arith.constant 0 : i32
    %2 = arith.cmpi ne, %1, %c0_i32_0 : i32
    scf.if %2 {
      %cst_25 = arith.constant 0.000000e+00 : f32
      %47 = vector.broadcast %cst_25 : f32 to vector<1x1xf32>
      %c0_26 = arith.constant 0 : index
      %c0_27 = arith.constant 0 : index
      %c0_28 = arith.constant 0 : index
      %48 = vector.load %arg4[%c0_26, %c0_27, %c0_28] : memref<1x1x1xf32, #tpu.memory_space<vmem>>, vector<1x1x1xf32>
      %49 = vector.shape_cast %48 : vector<1x1x1xf32> to vector<1x1xf32>
      %50 = vector.shape_cast %47 : vector<1x1xf32> to vector<1x1x1xf32>
      tpu.vector_store %arg4[%c0_26, %c0_27, %c0_28], %50 {strides = array<i32>} : memref<1x1x1xf32, #tpu.memory_space<vmem>>, vector<1x1x1xf32>,
      %c0_i32_29 = arith.constant 0 : i32
      %51 = vector.broadcast %c0_i32_29 : i32 to vector<1x1xi32>
      %c0_30 = arith.constant 0 : index
      %c0_31 = arith.constant 0 : index
      %c0_32 = arith.constant 0 : index
      %52 = vector.load %arg5[%c0_30, %c0_31, %c0_32] : memref<1x1x1xi32, #tpu.memory_space<vmem>>, vector<1x1x1xi32>
      %53 = vector.shape_cast %52 : vector<1x1x1xi32> to vector<1x1xi32>
      %54 = vector.shape_cast %51 : vector<1x1xi32> to vector<1x1x1xi32>
      tpu.vector_store %arg5[%c0_30, %c0_31, %c0_32], %54 {strides = array<i32>} : memref<1x1x1xi32, #tpu.memory_space<vmem>>, vector<1x1x1xi32>,
    } else {
    }
    %c0 = arith.constant 0 : index
    %c0_1 = arith.constant 0 : index
    %c0_2 = arith.constant 0 : index
    %3 = vector.load %arg3[%c0, %c0_1, %c0_2] : memref<1x8x1xi32, #tpu.memory_space<vmem>>, vector<1x8x1xi32>
    %4 = vector.shape_cast %3 : vector<1x8x1xi32> to vector<8x1xi32>
    %5 = tpu.iota {dimensions = array<i32: 1>} : vector<8x32xi32>
    %c0_3 = arith.constant 0 : index
    %c0_4 = arith.constant 0 : index
    %c0_5 = arith.constant 0 : index
    %6 = vector.load %arg2[%c0_3, %c0_4, %c0_5] : memref<1x8x32xf32, #tpu.memory_space<vmem>>, vector<1x8x32xf32>
    %7 = vector.shape_cast %6 : vector<1x8x32xf32> to vector<8x32xf32>
    %c0_i32_6 = arith.constant 0 : i32
    %8 = vector.broadcast %c0_i32_6 : i32 to vector<8x1xi32>
    %9 = arith.subi %4, %8 : vector<8x1xi32>
    %10 = vector.broadcast %9 : vector<8x1xi32> to vector<8x32xi32>
    %11 = arith.cmpi eq, %5, %10 : vector<8x32xi32>
    %cst = arith.constant 0.000000e+00 : f32
    %12 = vector.broadcast %cst : f32 to vector<8x32xf32>
    %13 = arith.select %11, %7, %12 : vector<8x32xi1>, vector<8x32xf32>
    %cst_7 = arith.constant dense<0.000000e+00> : vector<8xf32>
    %14 = vector.multi_reduction <add>, %13, %cst_7 [1] : vector<8x32xf32> to vector<8xf32>
    %15 = vector.shape_cast %14 : vector<8xf32> to vector<8x1xf32>
    %cst_8 = arith.constant dense<0xFF800000> : vector<8xf32>
    %16 = vector.multi_reduction <maximumf>, %7, %cst_8 [1] : vector<8x32xf32> to vector<8xf32>
    %17 = vector.shape_cast %16 : vector<8xf32> to vector<8x1xf32>
    %18 = vector.broadcast %17 : vector<8x1xf32> to vector<8x32xf32>
    %19 = arith.subf %7, %18 : vector<8x32xf32>
    %20 = math.exp %19 : vector<8x32xf32>
    %cst_9 = arith.constant dense<0.000000e+00> : vector<8xf32>
    %21 = vector.multi_reduction <add>, %20, %cst_9 [1] : vector<8x32xf32> to vector<8xf32>
    %22 = vector.shape_cast %21 : vector<8xf32> to vector<8x1xf32>
    %23 = math.log %22 : vector<8x1xf32>
    %24 = arith.addf %23, %17 : vector<8x1xf32>
    %c2_i32 = arith.constant 2 : i32
    %25 = vector.broadcast %c2_i32 : i32 to vector<8x1xi32>
    %26 = arith.cmpi ne, %4, %25 : vector<8x1xi32>
    %27 = arith.subf %24, %15 : vector<8x1xf32>
    %cst_10 = arith.constant 0.000000e+00 : f32
    %28 = vector.broadcast %cst_10 : f32 to vector<8x1xf32>
    %29 = arith.select %26, %27, %28 : vector<8x1xi1>, vector<8x1xf32>
    %c0_11 = arith.constant 0 : index
    %c0_12 = arith.constant 0 : index
    %c0_13 = arith.constant 0 : index
    %30 = vector.load %arg4[%c0_11, %c0_12, %c0_13] : memref<1x1x1xf32, #tpu.memory_space<vmem>>, vector<1x1x1xf32>
    %31 = vector.shape_cast %30 : vector<1x1x1xf32> to vector<1x1xf32>
    %cst_14 = arith.constant dense<0.000000e+00> : vector<1xf32>
    %32 = vector.multi_reduction <add>, %29, %cst_14 [0] : vector<8x1xf32> to vector<1xf32>
    %33 = vector.shape_cast %32 : vector<1xf32> to vector<1x1xf32>
    %34 = arith.addf %31, %33 : vector<1x1xf32>
    %c0_15 = arith.constant 0 : index
    %c0_16 = arith.constant 0 : index
    %c0_17 = arith.constant 0 : index
    %35 = vector.load %arg4[%c0_15, %c0_16, %c0_17] : memref<1x1x1xf32, #tpu.memory_space<vmem>>, vector<1x1x1xf32>
    %36 = vector.shape_cast %35 : vector<1x1x1xf32> to vector<1x1xf32>
    %37 = vector.shape_cast %34 : vector<1x1xf32> to vector<1x1x1xf32>
    tpu.vector_store %arg4[%c0_15, %c0_16, %c0_17], %37 {strides = array<i32>} : memref<1x1x1xf32, #tpu.memory_space<vmem>>, vector<1x1x1xf32>,
    %c0_18 = arith.constant 0 : index
    %c0_19 = arith.constant 0 : index
    %c0_20 = arith.constant 0 : index
    %38 = vector.load %arg5[%c0_18, %c0_19, %c0_20] : memref<1x1x1xi32, #tpu.memory_space<vmem>>, vector<1x1x1xi32>
    %39 = vector.shape_cast %38 : vector<1x1x1xi32> to vector<1x1xi32>
    %40 = arith.extui %26 : vector<8x1xi1> to vector<8x1xi32>
    %cst_21 = arith.constant dense<0> : vector<1xi32>
    %41 = vector.multi_reduction <add>, %40, %cst_21 [0] : vector<8x1xi32> to vector<1xi32>
    %42 = vector.shape_cast %41 : vector<1xi32> to vector<1x1xi32>
    %43 = arith.addi %39, %42 : vector<1x1xi32>
    %c0_22 = arith.constant 0 : index
    %c0_23 = arith.constant 0 : index
    %c0_24 = arith.constant 0 : index
    %44 = vector.load %arg5[%c0_22, %c0_23, %c0_24] : memref<1x1x1xi32, #tpu.memory_space<vmem>>, vector<1x1x1xi32>
    %45 = vector.shape_cast %44 : vector<1x1x1xi32> to vector<1x1xi32>
    %46 = vector.shape_cast %43 : vector<1x1xi32> to vector<1x1x1xi32>
    tpu.vector_store %arg5[%c0_22, %c0_23, %c0_24], %46 {strides = array<i32>} : memref<1x1x1xi32, #tpu.memory_space<vmem>>, vector<1x1x1xi32>,
    return
  }
  func.func @transform_0(%arg0: i32, %arg1: i32) -> (i32, i32, i32) {
    %c1_i32 = arith.constant 1 : i32
    %0 = arith.muli %arg0, %c1_i32 : i32
    %1 = arith.addi %0, %arg1 : i32
    %c1_i32_0 = arith.constant 1 : i32
    %2 = arith.addi %1, %c1_i32_0 : i32
    %c0_i32 = arith.constant 0 : i32
    %c0_i32_1 = arith.constant 0 : i32
    %c0_i32_2 = arith.constant 0 : i32
    return %2, %c0_i32, %c0_i32_1 : i32, i32, i32
  }
  func.func @transform_1(%arg0: i32, %arg1: i32) -> (i32, i32, i32) {
    %c1_i32 = arith.constant 1 : i32
    %0 = arith.muli %arg0, %c1_i32 : i32
    %1 = arith.addi %0, %arg1 : i32
    %c1_i32_0 = arith.constant 1 : i32
    %2 = arith.addi %1, %c1_i32_0 : i32
    %c0_i32 = arith.constant 0 : i32
    %c0_i32_1 = arith.constant 0 : i32
    %c0_i32_2 = arith.constant 0 : i32
    return %2, %c0_i32, %c0_i32_1 : i32, i32, i32
  }
  func.func @transform_2(%arg0: i32, %arg1: i32) -> (i32, i32, i32) {
    %c0_i32 = arith.constant 0 : i32
    %c0_i32_0 = arith.constant 0 : i32
    %c0_i32_1 = arith.constant 0 : i32
    return %arg0, %c0_i32, %c0_i32_0 : i32, i32, i32
  }
  func.func @transform_3(%arg0: i32, %arg1: i32) -> (i32, i32, i32) {
    %c0_i32 = arith.constant 0 : i32
    %c0_i32_0 = arith.constant 0 : i32
    %c0_i32_1 = arith.constant 0 : i32
    return %arg0, %c0_i32, %c0_i32_0 : i32, i32, i32
  }
}

</mosaic_0001>

<llo_original>
// kernel: sequence_softmax_cross_entropy_loss.1
$region0: #{sequence_softmax_cross_entropy_loss.1}
  #allocation0 [shape = 'u32[]', space=smem, size = 0x4, offset = 0x4, fixed_abs, tag = 'smem constant byte address 0x4 - core index']
  #allocation1 [shape = 'u32[144,128]{1,0:T(1,128)}', space=vmem, size = 0x12000, scoped, tag = 'internal scratch']
  %s0 = inlined_call_operand.hbm [shape: f32[2,8,32], index: 0, kind: input, shape index: {}]
  %s1 = inlined_call_operand.hbm [shape: s32[2,8,1], index: 1, kind: input, shape index: {}]
  %s2 = inlined_call_operand.hbm [shape: f32[1,1,1], index: 2, kind: output, shape index: {0}]
  %s3 = inlined_call_operand.hbm [shape: s32[1,1,1], index: 3, kind: output, shape index: {1}]
  %4 = xla_tuple %s2, %s3
  %s5 = sld [smem:[#allocation0]]
  $region38: #{sequence_softmax_cross_entropy_loss.1} parent=0
    _
  %s7 = ssub.s32 1, %s5
  %s8 = scalar_select 0, %s7, %s5
  $region1: #{sequence_softmax_cross_entropy_loss.1} parent=0
    #allocation2 [shape = 'u8[4096]{0}', space=vmem, size = 0x1000, scoped, tag = 'input window, operand 0, single buffered']
    #allocation3 [shape = 's32[1]{0}', space=sflag, size = 0x4, scoped, tag = 'scoped memory for sequence_softmax_cross_entropy_loss.1']
    #allocation4 [shape = 's32[1]{0}', space=sflag, size = 0x4, scoped, tag = 'scoped memory for sequence_softmax_cross_entropy_loss.1']
    #allocation5 [shape = 'u8[4096]{0}', space=vmem, size = 0x1000, scoped, tag = 'input window, operand 1, single buffered']
    #allocation6 [shape = 's32[1]{0}', space=sflag, size = 0x4, scoped, tag = 'scoped memory for sequence_softmax_cross_entropy_loss.1']
    #allocation7 [shape = 'u8[512]{0}', space=vmem, size = 0x400, scoped, tag = 'output window, operand 0, single buffered']
    #allocation8 [shape = 'u8[512]{0}', space=vmem, size = 0x400, scoped, tag = 'output window, operand 1, single buffered']
    #allocation9 [shape = 's32[1]{0}', space=sflag, size = 0x4, scoped, tag = 'scoped memory for sequence_softmax_cross_entropy_loss.1']
    %9 = vsyncpa [#allocation3], 0
    %10 = vsyncpa [#allocation6], 0
    %11 = vsyncpa [#allocation4], 0
    %12 = vsyncpa [#allocation9], 0
    // Predicated region
    $region2: #{sequence_softmax_cross_entropy_loss.1} parent=1 // pred_check
      _
    $region3: #{sequence_softmax_cross_entropy_loss.1} parent=1 // pred_check_branch
      %14 = sbr.rel (0) target = $region5
    $region4: #{sequence_softmax_cross_entropy_loss.1} parent=1 // pred_region
      %s15 = sadd.s32 0, 0
      %s16 = sadd.s32 %s15, 1
      %s18 = ssub.s32 128, 128
      %19 = vsyncadd [#allocation3], %s18
      %s20 = smul.addr %s16, 128
      %s21 = scalar_lea.hbm %s0, %s20
      %s23 = sshll.u32 [#allocation2], 4
      %s24 = int_to_ptr.vmem [resolvable:$true] %s23
      %26 = dma.hbm_to_vmem [thread:$0]  %s21, 128, %s24, [#allocation3]
    $region5: #{sequence_softmax_cross_entropy_loss.1} parent=1 // pred_fallthru
      _
    // Predicated region
    $region6: #{sequence_softmax_cross_entropy_loss.1} parent=1 // pred_check
      _
    $region7: #{sequence_softmax_cross_entropy_loss.1} parent=1 // pred_check_branch
      %28 = sbr.rel (0) target = $region9
    $region8: #{sequence_softmax_cross_entropy_loss.1} parent=1 // pred_region
      %s29 = sadd.s32 0, 0
      %s30 = sadd.s32 %s29, 1
      %s32 = ssub.s32 128, 128
      %33 = vsyncadd [#allocation6], %s32
      %s34 = smul.addr %s30, 128
      %s35 = scalar_lea.hbm %s1, %s34
      %s37 = sshll.u32 [#allocation5], 4
      %s38 = int_to_ptr.vmem [resolvable:$true] %s37
      %40 = dma.hbm_to_vmem [thread:$0]  %s35, 128, %s38, [#allocation6]
    $region9: #{sequence_softmax_cross_entropy_loss.1} parent=1 // pred_fallthru
      _
    // Predicated region
    $region10: #{sequence_softmax_cross_entropy_loss.1} parent=1 // pred_check
      _
    $region11: #{sequence_softmax_cross_entropy_loss.1} parent=1 // pred_check_branch
      %42 = sbr.rel (0) target = $region13
    $region12: #{sequence_softmax_cross_entropy_loss.1} parent=1 // pred_region
      %43 = dma.done [#allocation3], 128
    $region13: #{sequence_softmax_cross_entropy_loss.1} parent=1 // pred_fallthru
      _
    // Predicated region
    $region14: #{sequence_softmax_cross_entropy_loss.1} parent=1 // pred_check
      _
    $region15: #{sequence_softmax_cross_entropy_loss.1} parent=1 // pred_check_branch
      %45 = sbr.rel (0) target = $region17
    $region16: #{sequence_softmax_cross_entropy_loss.1} parent=1 // pred_region
      %46 = dma.done [#allocation6], 128
    $region17: #{sequence_softmax_cross_entropy_loss.1} parent=1 // pred_fallthru
      _
    %s47 = sadd.s32 0, 0
    %s48 = sadd.s32 %s47, 1
    %s49 = sadd.s32 0, 0
    %s50 = sadd.s32 %s49, 1
    %p51 = scmp.eq.s32.totalorder 0, 0
    // Predicated region
    $region18: #{sequence_softmax_cross_entropy_loss.1} parent=1 // pred_check
      %p52 = pneg %p51
    $region19: #{sequence_softmax_cross_entropy_loss.1} parent=1 // pred_check_branch
      %54 = sbr.rel (%p52) target = $region21
    $region20: #{sequence_softmax_cross_entropy_loss.1} parent=1 // pred_region
      %vm55 = vcmask 0
      %56 = vst.msk [vmem:[#allocation7] sm:$0x1] %vm55, 0.0
      %57 = vst.msk [vmem:[#allocation8] sm:$0x1] %vm55, 0
    $region21: #{sequence_softmax_cross_entropy_loss.1} parent=1 // pred_fallthru
      _
    %v58 = vld [vmem:[#allocation5] sm:$0xff]
    %v59 = vlaneseq
    %v60 = vand.u32 %v59, 127
    %v61 = vld [vmem:[#allocation2] sm:$0xff]
    %62 = vset.pattern.permute.xlu0 0
    %63 = vperm.xlu0 %62, %v58
    %v64 = vpop.permute.xlu0 %63
    %vm65 = vcmp.eq.s32.totalorder %v60, %v64
    %v66 = vsel %vm65, %v61, 0.0
    %vm67 = vcmask 261120
    %v68 = vsel %vm67, %v66, 0.0
    %69 = vadd.xlane.f32.xlu0 %v68
    %v70 = vpop.xlane.xlu0 %69
    %v71 = vsel %vm67, %v61, -inf
    %72 = vmax.xlane.f32.xlu0 %v71
    %v73 = vpop.xlane.xlu0 %72
    %v74 = vsub.f32 %v61, %v73
    %v75 = vmul.f32 %v74, 1.442695
    %v76 = vpow.pop %v75
    %v77 = vsel %vm67, %v76, 0.0
    %78 = vadd.xlane.f32.xlu0 %v77
    %v79 = vpop.xlane.xlu0 %78
    %v80 = vlog2.pop %v79
    %v81 = vmul.f32 %v80, 0.6931472
    %v82 = vadd.f32 %v81, %v73
    %vm83 = vcmp.ne.s32.totalorder %v58, 2
    %v84 = vsub.f32 %v82, %v70
    %v85 = vsel %vm83, %v84, 0.0
    %v86 = vld [vmem:[#allocation7] sm:$0x1]
    %vm87 = vcmask 7168
    %v88 = vsel %vm87, %v85, 0.0
    %v89 = vrot.slane %v88, 4
    %v90 = vadd.f32 %v88, %v89
    %v91 = vrot.slane %v90, 2
    %v92 = vadd.f32 %v90, %v91
    %v93 = vrot.slane %v92, 1
    %v94 = vadd.f32 %v92, %v93
    %v95 = vadd.f32 %v86, %v94
    %vm96 = vcmask 0
    %97 = vst.msk [vmem:[#allocation7] sm:$0x1] %vm96, %v95
    %v98 = vld [vmem:[#allocation8] sm:$0x1]
    %v99 = vsel %vm83, 1, 0
    %v100 = vsel %vm87, %v99, 0
    %v101 = vrot.slane %v100, 4
    %v102 = vadd.s32 %v100, %v101
    %v103 = vrot.slane %v102, 2
    %v104 = vadd.s32 %v102, %v103
    %v105 = vrot.slane %v104, 1
    %v106 = vadd.s32 %v104, %v105
    %v107 = vadd.s32 %v98, %v106
    %108 = vst.msk [vmem:[#allocation8] sm:$0x1] %vm96, %v107
    // Predicated region
    $region22: #{sequence_softmax_cross_entropy_loss.1} parent=1 // pred_check
      _
    $region23: #{sequence_softmax_cross_entropy_loss.1} parent=1 // pred_check_branch
      %110 = sbr.rel (0) target = $region25
    $region24: #{sequence_softmax_cross_entropy_loss.1} parent=1 // pred_region
      %s112 = ssub.s32 16, 16
      %113 = vsyncadd [#allocation4], %s112
      %s115 = sshll.u32 [#allocation7], 4
      %s116 = int_to_ptr.vmem [resolvable:$true] %s115
      %118 = dma.vmem_to_hbm [thread:$0]  %s116, 16, %s2, [#allocation4]
    $region25: #{sequence_softmax_cross_entropy_loss.1} parent=1 // pred_fallthru
      _
    // Predicated region
    $region26: #{sequence_softmax_cross_entropy_loss.1} parent=1 // pred_check
      _
    $region27: #{sequence_softmax_cross_entropy_loss.1} parent=1 // pred_check_branch
      %120 = sbr.rel (0) target = $region29
    $region28: #{sequence_softmax_cross_entropy_loss.1} parent=1 // pred_region
      %s122 = ssub.s32 16, 16
      %123 = vsyncadd [#allocation9], %s122
      %s125 = sshll.u32 [#allocation8], 4
      %s126 = int_to_ptr.vmem [resolvable:$true] %s125
      %128 = dma.vmem_to_hbm [thread:$0]  %s126, 16, %s3, [#allocation9]
    $region29: #{sequence_softmax_cross_entropy_loss.1} parent=1 // pred_fallthru
      _
    // Predicated region
    $region30: #{sequence_softmax_cross_entropy_loss.1} parent=1 // pred_check
      _
    $region31: #{sequence_softmax_cross_entropy_loss.1} parent=1 // pred_check_branch
      %130 = sbr.rel (0) target = $region33
    $region32: #{sequence_softmax_cross_entropy_loss.1} parent=1 // pred_region
      %131 = dma.done [#allocation4], 16
    $region33: #{sequence_softmax_cross_entropy_loss.1} parent=1 // pred_fallthru
      _
    // Predicated region
    $region34: #{sequence_softmax_cross_entropy_loss.1} parent=1 // pred_check
      _
    $region35: #{sequence_softmax_cross_entropy_loss.1} parent=1 // pred_check_branch
      %133 = sbr.rel (0) target = $region37
    $region36: #{sequence_softmax_cross_entropy_loss.1} parent=1 // pred_region
      %134 = dma.done [#allocation9], 16
    $region37: #{sequence_softmax_cross_entropy_loss.1} parent=1 // pred_fallthru
      _
    %135 = vsyncpa [#allocation3], 1
    %136 = vsyncpa [#allocation6], 1
    %137 = vsyncpa [#allocation4], 1
    %138 = vsyncpa [#allocation9], 1

</llo_original>
